<compile_context>
chip_gen: v5e
topology: v5e:2x2
jax: 0.10.0
libtpu: 0.0.40
codegen_flags: <defaults>
</compile_context>

<pallas_src>
import jax
import jax.numpy as jnp
from jax.experimental import pallas as pl
from jax.experimental.pallas import tpu as pltpu


def _round_up(x, m):
    return (x + m - 1) // m * m


def _bmm_kernel_acc(x1_ref, x2_ref, o_ref, acc_ref):
    # Multi-step K loop: x1_ref (tm, tk), x2_ref (tk, tn), acc_ref (tm, tn) f32.
    k = pl.program_id(3)

    @pl.when(k == 0)
    def _():
        acc_ref[...] = jnp.zeros_like(acc_ref)

    acc_ref[...] += jnp.dot(
        x1_ref[...], x2_ref[...], preferred_element_type=jnp.float32
    )

    @pl.when(k == pl.num_programs(3) - 1)
    def _():
        o_ref[...] = acc_ref[...].astype(o_ref.dtype)


def _bmm_kernel_single_k(x1_ref, x2_ref, o_ref):
    # K fits in one tile: no scratch accumulator needed.
    o_ref[...] = jnp.dot(
        x1_ref[...], x2_ref[...], preferred_element_type=jnp.float32
    ).astype(o_ref.dtype)


def our_matmul(x1, x2, *, tm=256, tn=256, tk=512, cast_to_bf16=False):
    """Batched matmul x1 @ x2 as a tiled Pallas TPU kernel.

    x1: (B, M, K), x2: (B, K, N) -> (B, M, N)

    cast_to_bf16: optionally feed the MXU bf16 inputs (f32 accumulation).
    Off by default to preserve the exact forward semantics / dtype of the
    original torch.matmul.
    """
    assert x1.ndim == 3 and x2.ndim == 3, (x1.shape, x2.shape)
    B, M, K = x1.shape
    B2, K2, N = x2.shape
    assert B == B2 and K == K2, (x1.shape, x2.shape)

    out_dtype = jnp.promote_types(x1.dtype, x2.dtype)

    if cast_to_bf16:
        x1 = x1.astype(jnp.bfloat16)
        x2 = x2.astype(jnp.bfloat16)

    # Clamp tile sizes to the hardware-aligned problem size:
    #   M is a sublane dim (multiple of 8), K/N are lane dims (multiple of 128).
    tm = min(tm, _round_up(M, 8))
    tn = min(tn, _round_up(N, 128))
    tk = min(tk, _round_up(K, 128))

    Mp = _round_up(M, tm)
    Kp = _round_up(K, tk)
    Np = _round_up(N, tn)

    # Zero-padding does not change the matmul result; padded rows/cols are
    # sliced off at the end.  Only pad when actually required.
    if (Mp, Kp) != (M, K):
        x1 = jnp.pad(x1, ((0, 0), (0, Mp - M), (0, Kp - K)))
    if (Kp, Np) != (K, N):
        x2 = jnp.pad(x2, ((0, 0), (0, Kp - K), (0, Np - N)))

    k_steps = Kp // tk

    x1_bytes = jnp.dtype(x1.dtype).itemsize
    x2_bytes = jnp.dtype(x2.dtype).itemsize
    out_bytes = jnp.dtype(out_dtype).itemsize
    cost = pl.CostEstimate(
        flops=2 * B * Mp * Np * Kp,
        transcendentals=0,
        bytes_accessed=(
            B * Mp * Kp * x1_bytes
            + B * Kp * Np * x2_bytes
            + B * Mp * Np * out_bytes
        ),
    )

    if k_steps == 1:
        # Whole K fits in one tile: 3-D grid, no accumulator scratch.
        grid_spec = pltpu.PrefetchScalarGridSpec(
            num_scalar_prefetch=0,
            grid=(B, Mp // tm, Np // tn),
            in_specs=[
                pl.BlockSpec((None, tm, Kp), lambda b, i, j: (b, i, 0)),
                pl.BlockSpec((None, Kp, tn), lambda b, i, j: (b, 0, j)),
            ],
            out_specs=pl.BlockSpec((None, tm, tn), lambda b, i, j: (b, i, j)),
        )
        kernel = _bmm_kernel_single_k
        dim_sem = ("parallel", "parallel", "parallel")
    else:
        grid_spec = pltpu.PrefetchScalarGridSpec(
            num_scalar_prefetch=0,
            grid=(B, Mp // tm, Np // tn, k_steps),
            in_specs=[
                # Batch dim squeezed (None) -> kernel sees 2-D tiles.
                pl.BlockSpec((None, tm, tk), lambda b, i, j, k: (b, i, k)),
                pl.BlockSpec((None, tk, tn), lambda b, i, j, k: (b, k, j)),
            ],
            out_specs=pl.BlockSpec((None, tm, tn), lambda b, i, j, k: (b, i, j)),
            scratch_shapes=[pltpu.VMEM((tm, tn), jnp.float32)],
        )
        kernel = _bmm_kernel_acc
        dim_sem = ("parallel", "parallel", "parallel", "arbitrary")

    out_padded = pl.pallas_call(
        kernel,
        out_shape=jax.ShapeDtypeStruct((B, Mp, Np), out_dtype),
        grid_spec=grid_spec,
        compiler_params=pltpu.CompilerParams(dimension_semantics=dim_sem),
        cost_estimate=cost,
    )(x1, x2)

    if (Mp, Np) != (M, N):
        out_padded = out_padded[:, :M, :N]
    return out_padded


if __name__ == "__main__":
    key = jax.random.PRNGKey(0)
    k1, k2, k3, k4 = jax.random.split(key, 4)

    # Small, BERT-ish shapes: batch=2, seq=8, hidden=32.
    B, M, K, N = 2, 8, 32, 32
    x1 = jax.random.normal(k1, (B, M, K), dtype=jnp.float32)
    x2 = jax.random.normal(k2, (B, K, N), dtype=jnp.float32)

    y = our_matmul(x1, x2)
    jax.block_until_ready(y)

    y_ref = jnp.matmul(x1, x2)
    assert y.shape == (B, M, N), y.shape
    assert jnp.allclose(y, y_ref, atol=1e-5, rtol=1e-5), "mismatch vs jnp.matmul"

    # Second check that exercises the real multi-tile path (padding + K-loop
    # accumulation + multiple M blocks).  Still cheap.
    B2_, M2_, K2_, N2_ = 1, 384, 640, 256
    a = jax.random.normal(k3, (B2_, M2_, K2_), dtype=jnp.float32)
    b = jax.random.normal(k4, (B2_, K2_, N2_), dtype=jnp.float32)
    y2 = our_matmul(a, b)
    jax.block_until_ready(y2)
    y2_ref = jnp.matmul(a, b)
    assert y2.shape == (B2_, M2_, N2_), y2.shape
    assert jnp.allclose(y2, y2_ref, atol=1e-2, rtol=1e-2), "tiled-path mismatch"

    print("KERNEL_OK")
</pallas_src>

<mosaic_0001>
module attributes {stable_mosaic.version = 11 : i64} {
  func.func @_bmm_kernel_single_k(%arg0: i32, %arg1: i32, %arg2: i32, %arg3: memref<1x8x128xf32, #tpu.memory_space<vmem>>, %arg4: memref<1x128x128xf32, #tpu.memory_space<vmem>>, %arg5: memref<1x8x128xf32, #tpu.memory_space<vmem>>) attributes {dimension_semantics = [#tpu.dimension_semantics<parallel>, #tpu.dimension_semantics<parallel>, #tpu.dimension_semantics<parallel>], iteration_bounds = array<i64: 2, 1, 1>, scalar_prefetch = 0 : i64, scratch_operands = 0 : i64, tpu.core_type = #tpu.core_type<tc>, window_params = [{transform_indices = @transform_0, window_bounds = array<i64: 1, 8, 128>}, {transform_indices = @transform_1, window_bounds = array<i64: 1, 128, 128>}, {transform_indices = @transform_2, window_bounds = array<i64: 1, 8, 128>}]} {
    %c0 = arith.constant 0 : index
    %c0_0 = arith.constant 0 : index
    %c0_1 = arith.constant 0 : index
    %0 = vector.load %arg3[%c0, %c0_0, %c0_1] : memref<1x8x128xf32, #tpu.memory_space<vmem>>, vector<1x8x128xf32>
    %1 = vector.shape_cast %0 : vector<1x8x128xf32> to vector<8x128xf32>
    %c0_2 = arith.constant 0 : index
    %c0_3 = arith.constant 0 : index
    %c0_4 = arith.constant 0 : index
    %2 = vector.load %arg4[%c0_2, %c0_3, %c0_4] : memref<1x128x128xf32, #tpu.memory_space<vmem>>, vector<1x128x128xf32>
    %3 = vector.shape_cast %2 : vector<1x128x128xf32> to vector<128x128xf32>
    %cst = arith.constant dense<0.000000e+00> : vector<8x128xf32>
    %4 = tpu.matmul %1, %3, %cst {dimension_numbers = #tpu.dot_dimension_numbers<[1], [0], [0], [1], [0, 0, 1, 1], [], []>} : vector<8x128xf32>, vector<128x128xf32>, vector<8x128xf32> -> vector<8x128xf32>
    %c0_5 = arith.constant 0 : index
    %c0_6 = arith.constant 0 : index
    %c0_7 = arith.constant 0 : index
    %5 = vector.load %arg5[%c0_5, %c0_6, %c0_7] : memref<1x8x128xf32, #tpu.memory_space<vmem>>, vector<1x8x128xf32>
    %6 = vector.shape_cast %5 : vector<1x8x128xf32> to vector<8x128xf32>
    %7 = vector.shape_cast %4 : vector<8x128xf32> to vector<1x8x128xf32>
    tpu.vector_store %arg5[%c0_5, %c0_6, %c0_7], %7 {strides = array<i32>} : memref<1x8x128xf32, #tpu.memory_space<vmem>>, vector<1x8x128xf32>,
    return
  }
  func.func @transform_0(%arg0: i32, %arg1: i32, %arg2: i32) -> (i32, i32, i32) {
    %c0_i32 = arith.constant 0 : i32
    %c0_i32_0 = arith.constant 0 : i32
    return %arg0, %arg1, %c0_i32 : i32, i32, i32
  }
  func.func @transform_1(%arg0: i32, %arg1: i32, %arg2: i32) -> (i32, i32, i32) {
    %c0_i32 = arith.constant 0 : i32
    %c0_i32_0 = arith.constant 0 : i32
    return %arg0, %c0_i32, %arg2 : i32, i32, i32
  }
  func.func @transform_2(%arg0: i32, %arg1: i32, %arg2: i32) -> (i32, i32, i32) {
    %c0_i32 = arith.constant 0 : i32
    return %arg0, %arg1, %arg2 : i32, i32, i32
  }
}

</mosaic_0001>

<llo_original>
// kernel: tpu_custom_call.1
$region0: #{tpu_custom_call.1}
  #allocation0 [shape = 'u32[]', space=smem, size = 0x4, offset = 0x4, fixed_abs, tag = 'smem constant byte address 0x4 - core index']
  #allocation1 [shape = 'u32[72,128]{1,0:T(1,128)}', space=vmem, size = 0x9000, scoped, tag = 'internal scratch']
  %s0 = inlined_call_operand.hbm [shape: f32[2,8,128], index: 0, kind: input, shape index: {}]
  %s1 = inlined_call_operand.hbm [shape: f32[2,128,128], index: 1, kind: input, shape index: {}]
  %s2 = inlined_call_operand.hbm [shape: f32[2,8,128], index: 2, kind: output, shape index: {}]
  %s3 = sld [smem:[#allocation0]]
  $region49: #{tpu_custom_call.1} parent=0
    _
  %s5 = ssub.s32 1, %s3
  %s6 = scalar_select 0, %s5, %s3
  $region1: #{tpu_custom_call.1} parent=0
    #allocation2 [shape = 'u8[8192]{0}', space=vmem, size = 0x2000, scoped, tag = 'input window, operand 0']
    #allocation3 [shape = 's32[2]{0}', space=sflag, size = 0x8, scoped, tag = 'scoped memory for tpu_custom_call.1']
    #allocation4 [shape = 's32[2]{0}', space=sflag, size = 0x8, scoped, tag = 'scoped memory for tpu_custom_call.1']
    #allocation5 [shape = 'u8[131072]{0}', space=vmem, size = 0x20000, scoped, tag = 'input window, operand 1']
    #allocation6 [shape = 's32[2]{0}', space=sflag, size = 0x8, scoped, tag = 'scoped memory for tpu_custom_call.1']
    #allocation7 [shape = 'u8[8192]{0}', space=vmem, size = 0x2000, scoped, tag = 'output window, operand 0']
    %7 = vsyncpa [#allocation3], 0
    %s8 = scalar_lea.sflag [#allocation3], 1
    %9 = vsyncpa %s8, 0
    %10 = vsyncpa [#allocation6], 0
    %s11 = scalar_lea.sflag [#allocation6], 1
    %12 = vsyncpa %s11, 0
    %13 = vsyncpa [#allocation4], 0
    %s14 = scalar_lea.sflag [#allocation4], 1
    %15 = vsyncpa %s14, 0
    loop: start=0, step=1, limit=4
    $region2: #{tpu_custom_call.1} parent=1 // loop_pre_header
      _
    $region3: #{tpu_custom_call.1} parent=1 // loop_header
      %s17 = sphi 0, %s21
      %p18 = scmp.ge.s32.totalorder %s17, 4
      %s24 = sphi 0, %s43
      %s25 = sphi 0, %s39
      %s26 = sphi 0, %s35
      %s27 = sphi 0, %s24
      %s28 = sphi 0, %s25
      %s29 = sphi 0, %s26
      %s30 = sphi 0, %s27
      %s31 = sphi 0, %s28
      %s32 = sphi 0, %s29
      %s48 = sphi 0, %s50
      %s51 = sphi 0, %s48
      %s52 = sphi 0, %s51
      %s68 = sphi 0, %s52
      %s76 = sphi 0, %s78
      %s79 = sphi 0, %s76
      %s80 = sphi 0, %s79
      %s96 = sphi 0, %s80
      %s106 = sphi 0, %s108
      %s109 = sphi 0, %s106
      %s110 = sphi 0, %s109
      %s126 = sphi 0, %s110
    $region4: #{tpu_custom_call.1} parent=1 // loop_header_branch
      %20 = sbr.rel (%p18) target = $region8
    $region5: #{tpu_custom_call.1} parent=1 // loop_body
      %s22 = ssub.s32 %s17, 1
      %s23 = ssub.s32 %s17, 2
      %s33 = sadd.s32 1, %s26
      %p34 = scmp.ge.s32.totalorder %s33, 1
      %s35 = scalar_select %p34, 0, %s33
      %s36 = sadd.s32 1, %s25
      %s37 = scalar_select %p34, %s36, %s25
      %p38 = scmp.ge.s32.totalorder %s37, 1
      %s39 = scalar_select %p38, 0, %s37
      %s40 = sadd.s32 1, %s24
      %s41 = scalar_select %p38, %s40, %s24
      %p42 = scmp.ge.s32.totalorder %s41, 2
      %s43 = scalar_select %p42, 0, %s41
      %s44 = ssub.s32 %s24, %s43
      %s45 = ssub.s32 %s25, %s39
      %s46 = sor.u32 %s44, %s45
      %p47 = scmp.eq.s32.totalorder %s46, 0
      %s49 = sadd.s32 %s48, 1
      %s50 = scalar_select %p47, %s48, %s49
      %p53 = pneg %p47
      %p54 = scmp.eq.s32.totalorder %s17, 1
      %p55 = por %p53, %p54
      %p56 = scmp.ne.s32.totalorder %s48, %s51
      %p57 = scmp.eq.s32.totalorder %s17, 0
      %p58 = por %p56, %p57
      %p59 = scmp.ne.s32.totalorder %s48, %s51
      %p60 = scmp.eq.s32.totalorder %s22, 1
      %p61 = por %p59, %p60
      %p62 = scmp.ne.s32.totalorder %s51, %s52
      %p63 = scmp.eq.s32.totalorder %s22, 0
      %p64 = por %p62, %p63
      %p65 = scmp.ne.s32.totalorder %s51, %s52
      %p66 = scmp.eq.s32.totalorder %s23, 1
      %p67 = por %p65, %p66
      %p69 = scmp.ne.s32.totalorder %s52, %s68
      %p70 = scmp.eq.s32.totalorder %s23, 0
      %p71 = por %p69, %p70
      %s72 = ssub.s32 %s24, %s43
      %s73 = ssub.s32 %s26, %s35
      %s74 = sor.u32 %s72, %s73
      %p75 = scmp.eq.s32.totalorder %s74, 0
      %s77 = sadd.s32 %s76, 1
      %s78 = scalar_select %p75, %s76, %s77
      %p81 = pneg %p75
      %p82 = scmp.eq.s32.totalorder %s17, 1
      %p83 = por %p81, %p82
      %p84 = scmp.ne.s32.totalorder %s76, %s79
      %p85 = scmp.eq.s32.totalorder %s17, 0
      %p86 = por %p84, %p85
      %p87 = scmp.ne.s32.totalorder %s76, %s79
      %p88 = scmp.eq.s32.totalorder %s22, 1
      %p89 = por %p87, %p88
      %p90 = scmp.ne.s32.totalorder %s79, %s80
      %p91 = scmp.eq.s32.totalorder %s22, 0
      %p92 = por %p90, %p91
      %p93 = scmp.ne.s32.totalorder %s79, %s80
      %p94 = scmp.eq.s32.totalorder %s23, 1
      %p95 = por %p93, %p94
      %p97 = scmp.ne.s32.totalorder %s80, %s96
      %p98 = scmp.eq.s32.totalorder %s23, 0
      %p99 = por %p97, %p98
      %s100 = ssub.s32 %s24, %s43
      %s101 = ssub.s32 %s25, %s39
      %s102 = sor.u32 %s100, %s101
      %s103 = ssub.s32 %s26, %s35
      %s104 = sor.u32 %s102, %s103
      %p105 = scmp.eq.s32.totalorder %s104, 0
      %s107 = sadd.s32 %s106, 1
      %s108 = scalar_select %p105, %s106, %s107
      %p111 = pneg %p105
      %p112 = scmp.eq.s32.totalorder %s17, 1
      %p113 = por %p111, %p112
      %p114 = scmp.ne.s32.totalorder %s106, %s109
      %p115 = scmp.eq.s32.totalorder %s17, 0
      %p116 = por %p114, %p115
      %p117 = scmp.ne.s32.totalorder %s106, %s109
      %p118 = scmp.eq.s32.totalorder %s22, 1
      %p119 = por %p117, %p118
      %p120 = scmp.ne.s32.totalorder %s109, %s110
      %p121 = scmp.eq.s32.totalorder %s22, 0
      %p122 = por %p120, %p121
      %p123 = scmp.ne.s32.totalorder %s109, %s110
      %p124 = scmp.eq.s32.totalorder %s23, 1
      %p125 = por %p123, %p124
      %p127 = scmp.ne.s32.totalorder %s110, %s126
      %p128 = scmp.eq.s32.totalorder %s23, 0
      %p129 = por %p127, %p128
      %p130 = scmp.le.s32.totalorder 1, %s17
      %p131 = scmp.lt.s32.totalorder %s17, 3
      %p132 = pnand %p130, %p131
      %p133 = pneg %p132
      // Predicated region
      $region9: #{tpu_custom_call.1} parent=5 // pred_check
        _
      $region10: #{tpu_custom_call.1} parent=5 // pred_check_branch
        %135 = sbr.rel (%p132) target = $region12
      $region11: #{tpu_custom_call.1} parent=5 // pred_region
        %s136 = ssub.s32 %s17, 1
      $region12: #{tpu_custom_call.1} parent=5 // pred_fallthru
        _
      %p137 = scmp.lt.s32.totalorder %s17, 2
      // Predicated region
      $region13: #{tpu_custom_call.1} parent=5 // pred_check
        %p138 = pneg %p137
      $region14: #{tpu_custom_call.1} parent=5 // pred_check_branch
        %140 = sbr.rel (%p138) target = $region16
      $region15: #{tpu_custom_call.1} parent=5 // pred_region
        // Predicated region
        $region17: #{tpu_custom_call.1} parent=15 // pred_check
          %p141 = pneg %p58
        $region18: #{tpu_custom_call.1} parent=15 // pred_check_branch
          %143 = sbr.rel (%p141) target = $region20
        $region19: #{tpu_custom_call.1} parent=15 // pred_region
          %s144 = sand.u32 %s48, 1
          %s145 = scalar_lea.sflag [#allocation3], %s144
          %s146 = sand.u32 %s48, 1
          %s147 = smul.addr %s146, 8
          %s148 = scalar_lea.vmem [#allocation2], %s147
          %150 = vsyncadd %s145, 0
          %s151 = sadd.s32 %s25, %s24
          %s152 = smul.addr %s151, 8
          %s153 = scalar_lea.hbm %s0, %s152
          %s155 = sshll.u32 %s153, 4
          %s156 = int_to_ptr.hbm [resolvable:$true] %s155
          %s157 = sshll.u32 %s148, 4
          %s158 = int_to_ptr.vmem [resolvable:$true] %s157
          %160 = dma.hbm_to_vmem [thread:$0]  %s156, 128, %s158, %s145
        $region20: #{tpu_custom_call.1} parent=15 // pred_fallthru
          _
        // Predicated region
        $region21: #{tpu_custom_call.1} parent=15 // pred_check
          %p161 = pneg %p86
        $region22: #{tpu_custom_call.1} parent=15 // pred_check_branch
          %163 = sbr.rel (%p161) target = $region24
        $region23: #{tpu_custom_call.1} parent=15 // pred_region
          %s164 = sand.u32 %s76, 1
          %s165 = scalar_lea.sflag [#allocation6], %s164
          %s166 = sand.u32 %s76, 1
          %s167 = smul.addr %s166, 128
          %s168 = scalar_lea.vmem [#allocation5], %s167
          %170 = vsyncadd %s165, 0
          %s171 = smul.addr %s24, 16
          %s172 = sadd.s32 %s26, %s171
          %s173 = smul.addr %s172, 8
          %s174 = scalar_lea.hbm %s1, %s173
          %s175 = sshll.u32 %s174, 4
          %s176 = int_to_ptr.hbm [resolvable:$true] %s175
          %s177 = sshll.u32 %s168, 4
          %s178 = int_to_ptr.vmem [resolvable:$true] %s177
          %183 = dma.hbm_to_vmem [thread:$0]  %s176, 2048, %s178, %s165, 128, 128, 8
        $region24: #{tpu_custom_call.1} parent=15 // pred_fallthru
          _
      $region16: #{tpu_custom_call.1} parent=5 // pred_fallthru
        _
      %p184 = scmp.le.s32.totalorder 1, %s17
      %p185 = scmp.lt.s32.totalorder %s17, 3
      %p186 = pnand %p184, %p185
      %p187 = pneg %p186
      // Predicated region
      $region25: #{tpu_custom_call.1} parent=5 // pred_check
        _
      $region26: #{tpu_custom_call.1} parent=5 // pred_check_branch
        %189 = sbr.rel (%p186) target = $region28
      $region27: #{tpu_custom_call.1} parent=5 // pred_region
        %s190 = ssub.s32 %s17, 1
        %s191 = sand.u32 %s51, 1
        %s192 = scalar_lea.sflag [#allocation3], %s191
        %s193 = sand.u32 %s51, 1
        %s194 = smul.addr %s193, 8
        %s195 = scalar_lea.vmem [#allocation2], %s194
        // Predicated region
        $region29: #{tpu_custom_call.1} parent=27 // pred_check
          %p196 = pneg %p64
        $region30: #{tpu_custom_call.1} parent=27 // pred_check_branch
          %198 = sbr.rel (%p196) target = $region32
        $region31: #{tpu_custom_call.1} parent=27 // pred_region
          %200 = dma.done %s192, 128
        $region32: #{tpu_custom_call.1} parent=27 // pred_fallthru
          _
        %s201 = sand.u32 %s79, 1
        %s202 = scalar_lea.sflag [#allocation6], %s201
        %s203 = sand.u32 %s79, 1
        %s204 = smul.addr %s203, 128
        %s205 = scalar_lea.vmem [#allocation5], %s204
        // Predicated region
        $region33: #{tpu_custom_call.1} parent=27 // pred_check
          %p206 = pneg %p92
        $region34: #{tpu_custom_call.1} parent=27 // pred_check_branch
          %208 = sbr.rel (%p206) target = $region36
        $region35: #{tpu_custom_call.1} parent=27 // pred_region
          %210 = dma.done %s202, 2048
        $region36: #{tpu_custom_call.1} parent=27 // pred_fallthru
          _
        %s211 = sand.u32 %s51, 1
        %s212 = scalar_lea.sflag [#allocation3], %s211
        %s213 = sand.u32 %s51, 1
        %s214 = smul.addr %s213, 8
        %s215 = scalar_lea.vmem [#allocation2], %s214
        %p216 = pneg %p64
        %p217 = pneg %p61
        %s218 = sand.u32 %s79, 1
        %s219 = scalar_lea.sflag [#allocation6], %s218
        %s220 = sand.u32 %s79, 1
        %s221 = smul.addr %s220, 128
        %s222 = scalar_lea.vmem [#allocation5], %s221
        %p223 = pneg %p92
        %p224 = pneg %p89
        %p225 = pneg %p122
        %p226 = pneg %p119
        %s227 = sand.u32 %s109, 1
        %s228 = scalar_lea.sflag [#allocation4], %s227
        %s229 = sand.u32 %s109, 1
        %s230 = smul.addr %s229, 8
        %s231 = scalar_lea.vmem [#allocation7], %s230
        %v232 = vld [vmem:[%s195] sm:$0xff]
        %v233 = vld [vmem:[%s205] sm:$0xff]
        %v234 = vld [vmem:[%s205 + $0x8] sm:$0xff]
        %v235 = vld [vmem:[%s205 + $0x10] sm:$0xff]
        %v236 = vld [vmem:[%s205 + $0x18] sm:$0xff]
        %v237 = vld [vmem:[%s205 + $0x20] sm:$0xff]
        %v238 = vld [vmem:[%s205 + $0x28] sm:$0xff]
        %v239 = vld [vmem:[%s205 + $0x30] sm:$0xff]
        %v240 = vld [vmem:[%s205 + $0x38] sm:$0xff]
        %v241 = vld [vmem:[%s205 + $0x40] sm:$0xff]
        %v242 = vld [vmem:[%s205 + $0x48] sm:$0xff]
        %v243 = vld [vmem:[%s205 + $0x50] sm:$0xff]
        %v244 = vld [vmem:[%s205 + $0x58] sm:$0xff]
        %v245 = vld [vmem:[%s205 + $0x60] sm:$0xff]
        %v246 = vld [vmem:[%s205 + $0x68] sm:$0xff]
        %v247 = vld [vmem:[%s205 + $0x70] sm:$0xff]
        %v248 = vld [vmem:[%s205 + $0x78] sm:$0xff]
        %249 = vmatpush.msra.mxu0 %v248
        %250 = vmatpush.msra.mxu0 %v247
        %251 = vmatpush.msra.mxu0 %v246
        %252 = vmatpush.msra.mxu0 %v245
        %253 = vmatpush.msra.mxu0 %v244
        %254 = vmatpush.msra.mxu0 %v243
        %255 = vmatpush.msra.mxu0 %v242
        %256 = vmatpush.msra.mxu0 %v241
        %257 = vmatpush.msra.mxu0 %v240
        %258 = vmatpush.msra.mxu0 %v239
        %259 = vmatpush.msra.mxu0 %v238
        %260 = vmatpush.msra.mxu0 %v237
        %261 = vmatpush.msra.mxu0 %v236
        %262 = vmatpush.msra.mxu0 %v235
        %263 = vmatpush.msra.mxu0 %v234
        %264 = vmatpush.msra.mxu0 %v233
        %265 = vmatmul.f32.gmra.mxu0 %v232
        %v266 = vpop.f32.mrf.mxu0
        %v267 = vadd.f32 0.0, %v266
        %268 = vdwg.mxu0
        %269 = vst [vmem:[%s231] sm:$0xff] %v267
        %s270 = sand.u32 %s109, 1
        %s271 = scalar_lea.sflag [#allocation4], %s270
        %s272 = sand.u32 %s109, 1
        %s273 = smul.addr %s272, 8
        %s274 = scalar_lea.vmem [#allocation7], %s273
        // Predicated region
        $region37: #{tpu_custom_call.1} parent=27 // pred_check
          %p275 = pneg %p119
        $region38: #{tpu_custom_call.1} parent=27 // pred_check_branch
          %277 = sbr.rel (%p275) target = $region40
        $region39: #{tpu_custom_call.1} parent=27 // pred_region
          %279 = vsyncadd %s271, 0
          %s280 = sadd.s32 %s29, %s28
          %s281 = sadd.s32 %s280, %s27
          %s282 = smul.addr %s281, 8
          %s283 = scalar_lea.hbm %s2, %s282
          %s285 = sshll.u32 %s274, 4
          %s286 = int_to_ptr.vmem [resolvable:$true] %s285
          %s287 = sshll.u32 %s283, 4
          %s288 = int_to_ptr.hbm [resolvable:$true] %s287
          %290 = dma.vmem_to_hbm [thread:$0]  %s286, 128, %s288, %s271
        $region40: #{tpu_custom_call.1} parent=27 // pred_fallthru
          _
      $region28: #{tpu_custom_call.1} parent=5 // pred_fallthru
        _
      %p291 = scmp.le.s32.totalorder 2, %s17
      // Predicated region
      $region41: #{tpu_custom_call.1} parent=5 // pred_check
        %p292 = pneg %p291
      $region42: #{tpu_custom_call.1} parent=5 // pred_check_branch
        %294 = sbr.rel (%p292) target = $region44
      $region43: #{tpu_custom_call.1} parent=5 // pred_region
        %s295 = ssub.s32 %s17, 2
        // Predicated region
        $region45: #{tpu_custom_call.1} parent=43 // pred_check
          %p296 = pneg %p125
        $region46: #{tpu_custom_call.1} parent=43 // pred_check_branch
          %298 = sbr.rel (%p296) target = $region48
        $region47: #{tpu_custom_call.1} parent=43 // pred_region
          %s299 = sand.u32 %s110, 1
          %s300 = scalar_lea.sflag [#allocation4], %s299
          %s301 = sand.u32 %s110, 1
          %s302 = smul.addr %s301, 8
          %s303 = scalar_lea.vmem [#allocation7], %s302
          %305 = dma.done %s300, 128
        $region48: #{tpu_custom_call.1} parent=43 // pred_fallthru
          _
      $region44: #{tpu_custom_call.1} parent=5 // pred_fallthru
        _
    $region6: #{tpu_custom_call.1} parent=1 // loop_footer
      %s21 = sadd.s32 1, %s17
    $region7: #{tpu_custom_call.1} parent=1 // loop_footer_branch
      %16 = sbr.rel target = $region3
    $region8: #{tpu_custom_call.1} parent=1 // loop_exit
      _
    %306 = vsyncpa [#allocation3], 1
    %s307 = scalar_lea.sflag [#allocation3], 1
    %308 = vsyncpa %s307, 1
    %309 = vsyncpa [#allocation6], 1
    %s310 = scalar_lea.sflag [#allocation6], 1
    %311 = vsyncpa %s310, 1
    %312 = vsyncpa [#allocation4], 1
    %s313 = scalar_lea.sflag [#allocation4], 1
    %314 = vsyncpa %s313, 1

</llo_original>
